<compile_context>
chip_gen: v5e
topology: v5e:2x2
jax: 0.10.0
libtpu: 0.0.40
codegen_flags: <defaults>
</compile_context>

<pallas_src>
import functools

import jax
import jax.numpy as jnp
from jax.experimental import pallas as pl
from jax.experimental.pallas import tpu as pltpu

EPS = 1e-5
LANE = 128
SUBLANE = 8


def _round_up(n, m):
    return (n + m - 1) // m * m


# ----------------------------------------------------------------------------
# Kernel: per batch-tile, two back-to-back MXU matmuls + bias/ReLU + residual.
# BatchNorm is already folded into (w1t, w2t, b_stacked) by the wrapper.
# ----------------------------------------------------------------------------
def _linear_block_kernel(x_ref, w1_ref, w2_ref, b_ref, o_ref):
    x = x_ref[...]                                   # [TB, L] f32 (kept for residual)
    b = b_ref[...]                                   # [2, L]  f32 folded biases

    xb = x.astype(w1_ref.dtype)                      # bf16 MXU inputs, f32 accumulate
    y = jnp.dot(xb, w1_ref[...], preferred_element_type=jnp.float32)
    y = jnp.maximum(y + b[0:1, :], 0.0)              # bias + ReLU (dropout = identity)

    y = jnp.dot(y.astype(w2_ref.dtype), w2_ref[...],
                preferred_element_type=jnp.float32)
    y = jnp.maximum(y + b[1:2, :], 0.0)

    o_ref[...] = (x + y).astype(o_ref.dtype)         # residual


# ----------------------------------------------------------------------------
# BN folding (exact in eval mode):
#   bn(z)_j = (z_j - m_j) * g_j / sqrt(v_j + eps) + be_j
#   =>  W'[j,i] = W[j,i] * s_j ;  b'_j = (b_j - m_j) * s_j + be_j ; s_j = g_j*rsqrt(v_j+eps)
# ----------------------------------------------------------------------------
def fold_params(params, *, eps=EPS, compute_dtype=jnp.bfloat16):
    def fold(w, b, g, be, m, v):
        s = g * jax.lax.rsqrt(v + eps)               # [out]
        w_t = (w * s[:, None]).T                     # [in, out], scale folded per column
        b_f = (b - m) * s + be                       # [out]
        return w_t, b_f

    w1t, b1 = fold(params["w1"], params["b1"], params["g1"],
                   params["be1"], params["m1"], params["v1"])
    w2t, b2 = fold(params["w2"], params["b2"], params["g2"],
                   params["be2"], params["m2"], params["v2"])
    return (w1t.astype(compute_dtype), w2t.astype(compute_dtype),
            jnp.stack([b1, b2]).astype(jnp.float32))


@functools.partial(jax.jit, static_argnames=("tile_b", "compute_dtype"))
def linear_block(x, params, *, tile_b=128, compute_dtype=jnp.bfloat16):
    """x: [B, L] float32; params: dict of the PyTorch module's parameters."""
    B, L = x.shape

    w1t, w2t, b_stacked = fold_params(params, compute_dtype=compute_dtype)

    # Lane-dense feature dim & MXU-friendly batch tile (pad, then slice at the end).
    Lp = _round_up(L, LANE)
    tb = min(tile_b, _round_up(B, SUBLANE))
    Bp = _round_up(B, tb)
    if Lp != L:
        w1t = jnp.pad(w1t, ((0, Lp - L), (0, Lp - L)))
        w2t = jnp.pad(w2t, ((0, Lp - L), (0, Lp - L)))
        b_stacked = jnp.pad(b_stacked, ((0, 0), (0, Lp - L)))
    xp = jnp.pad(x, ((0, Bp - B), (0, Lp - L))) if (Bp != B or Lp != L) else x

    wbytes = w1t.dtype.itemsize
    cost = pl.CostEstimate(
        flops=2 * 2 * Bp * Lp * Lp,                          # two [Bp,Lp]x[Lp,Lp] matmuls
        transcendentals=0,
        bytes_accessed=2 * Bp * Lp * 4 + 2 * Lp * Lp * wbytes + 2 * Lp * 4)

    grid_spec = pltpu.PrefetchScalarGridSpec(
        num_scalar_prefetch=0,
        grid=(Bp // tb,),
        in_specs=[
            pl.BlockSpec((tb, Lp), lambda i: (i, 0)),        # streaming x tile
            pl.BlockSpec((Lp, Lp), lambda i: (0, 0)),        # resident folded W1^T (bf16)
            pl.BlockSpec((Lp, Lp), lambda i: (0, 0)),        # resident folded W2^T (bf16)
            pl.BlockSpec((2, Lp), lambda i: (0, 0)),         # stacked folded biases
        ],
        out_specs=pl.BlockSpec((tb, Lp), lambda i: (i, 0)),
    )

    out = pl.pallas_call(
        _linear_block_kernel,
        out_shape=jax.ShapeDtypeStruct((Bp, Lp), x.dtype),
        grid_spec=grid_spec,
        compiler_params=pltpu.CompilerParams(
            dimension_semantics=("parallel",),               # megacore split on v7x
            vmem_limit_bytes=32 * 1024 * 1024),
        cost_estimate=cost,
    )(xp, w1t, w2t, b_stacked)

    if Bp != B or Lp != L:
        out = out[:B, :L]
    return out


# ----------------------------------------------------------------------------
# References for correctness checking.
# ----------------------------------------------------------------------------
def _reference_f32(x, p):
    """Full-precision PyTorch eval-mode semantics (no folding)."""
    def bn(y, g, be, m, v):
        return (y - m) * jax.lax.rsqrt(v + EPS) * g + be
    y = x @ p["w1"].T + p["b1"]
    y = jnp.maximum(bn(y, p["g1"], p["be1"], p["m1"], p["v1"]), 0.0)
    y = y @ p["w2"].T + p["b2"]
    y = jnp.maximum(bn(y, p["g2"], p["be2"], p["m2"], p["v2"]), 0.0)
    return x + y


def _reference_folded(x, w1t, w2t, b_stacked):
    """Same folding + bf16-input matmul math as the kernel (tight check)."""
    y = jnp.dot(x.astype(w1t.dtype), w1t, preferred_element_type=jnp.float32) + b_stacked[0]
    y = jnp.maximum(y, 0.0)
    y = jnp.dot(y.astype(w2t.dtype), w2t, preferred_element_type=jnp.float32) + b_stacked[1]
    y = jnp.maximum(y, 0.0)
    return x + y


def init_params(key, l_size):
    """Synthetic parameters matching the PyTorch module, with non-trivial BN
    affine/running stats so the folding is actually exercised."""
    ks = jax.random.split(key, 12)
    bound = 1.0 / (l_size ** 0.5)
    u = lambda k, shape, lo, hi: jax.random.uniform(k, shape, jnp.float32, lo, hi)
    return {
        # nn.Linear: weight [out, in], bias [out]
        "w1": u(ks[0], (l_size, l_size), -bound, bound),
        "b1": u(ks[1], (l_size,), -bound, bound),
        "w2": u(ks[2], (l_size, l_size), -bound, bound),
        "b2": u(ks[3], (l_size,), -bound, bound),
        # BatchNorm1d: gamma, beta, running_mean, running_var
        "g1": u(ks[4], (l_size,), 0.5, 1.5),
        "be1": 0.1 * jax.random.normal(ks[5], (l_size,), jnp.float32),
        "m1": 0.1 * jax.random.normal(ks[6], (l_size,), jnp.float32),
        "v1": u(ks[7], (l_size,), 0.5, 1.5),
        "g2": u(ks[8], (l_size,), 0.5, 1.5),
        "be2": 0.1 * jax.random.normal(ks[9], (l_size,), jnp.float32),
        "m2": 0.1 * jax.random.normal(ks[10], (l_size,), jnp.float32),
        "v2": u(ks[11], (l_size,), 0.5, 1.5),
    }


if __name__ == "__main__":
    key = jax.random.PRNGKey(0)
    kx, kp = jax.random.split(key)

    B, L = 256, 128                    # lane-dense features, MXU-friendly batch
    x = jax.random.normal(kx, (B, L), jnp.float32)
    params = init_params(kp, L)

    out = jax.block_until_ready(linear_block(x, params))
    assert out.shape == (B, L)

    # Tight check: same folding + bf16 matmul inputs as the kernel.
    w1t, w2t, b_stacked = fold_params(params)
    ref_folded = _reference_folded(x, w1t, w2t, b_stacked)
    assert jnp.allclose(out, ref_folded, atol=1e-3, rtol=1e-3), \
        "mismatch vs folded bf16 reference"

    # Loose semantic check vs full-f32 PyTorch eval-mode math
    # (gap is dominated by bf16 rounding of the weights/activations).
    ref_f32 = _reference_f32(x, params)
    max_err = float(jnp.max(jnp.abs(out - ref_f32)))
    assert max_err < 1e-1, f"semantic mismatch vs f32 reference: max abs err {max_err}"

    print("KERNEL_OK")
</pallas_src>

<mosaic_0001>
module attributes {stable_mosaic.version = 11 : i64} {
  func.func @_linear_block_kernel(%arg0: i32, %arg1: memref<128x128xf32, #tpu.memory_space<vmem>>, %arg2: memref<128x128xbf16, #tpu.memory_space<vmem>>, %arg3: memref<128x128xbf16, #tpu.memory_space<vmem>>, %arg4: memref<2x128xf32, #tpu.memory_space<vmem>>, %arg5: memref<128x128xf32, #tpu.memory_space<vmem>>) attributes {dimension_semantics = [#tpu.dimension_semantics<parallel>], iteration_bounds = array<i64: 2>, scalar_prefetch = 0 : i64, scratch_operands = 0 : i64, tpu.core_type = #tpu.core_type<tc>, window_params = [{transform_indices = @transform_0, window_bounds = array<i64: 128, 128>}, {pipeline_mode = #tpu.pipeline_mode<synchronous>, transform_indices = @transform_1, window_bounds = array<i64: 128, 128>}, {pipeline_mode = #tpu.pipeline_mode<synchronous>, transform_indices = @transform_2, window_bounds = array<i64: 128, 128>}, {pipeline_mode = #tpu.pipeline_mode<synchronous>, transform_indices = @transform_3, window_bounds = array<i64: 2, 128>}, {transform_indices = @transform_4, window_bounds = array<i64: 128, 128>}]} {
    %c0 = arith.constant 0 : index
    %c0_0 = arith.constant 0 : index
    %0 = vector.load %arg1[%c0, %c0_0] : memref<128x128xf32, #tpu.memory_space<vmem>>, vector<128x128xf32>
    %c0_1 = arith.constant 0 : index
    %c0_2 = arith.constant 0 : index
    %1 = vector.load %arg4[%c0_1, %c0_2] : memref<2x128xf32, #tpu.memory_space<vmem>>, vector<2x128xf32>
    %2 = arith.truncf %0 : vector<128x128xf32> to vector<128x128xbf16>
    %c0_3 = arith.constant 0 : index
    %c0_4 = arith.constant 0 : index
    %3 = vector.load %arg2[%c0_3, %c0_4] : memref<128x128xbf16, #tpu.memory_space<vmem>>, vector<128x128xbf16>
    %cst = arith.constant dense<0.000000e+00> : vector<128x128xf32>
    %4 = tpu.matmul %2, %3, %cst {dimension_numbers = #tpu.dot_dimension_numbers<[1], [0], [0], [1], [0, 0, 1, 1], [], []>} : vector<128x128xbf16>, vector<128x128xbf16>, vector<128x128xf32> -> vector<128x128xf32>
    %5 = vector.extract_strided_slice %1 {offsets = [0, 0], sizes = [1, 128], strides = [1, 1]} : vector<2x128xf32> to vector<1x128xf32>
    %6 = vector.broadcast %5 : vector<1x128xf32> to vector<128x128xf32>
    %7 = arith.addf %4, %6 : vector<128x128xf32>
    %cst_5 = arith.constant 0.000000e+00 : f32
    %8 = vector.broadcast %cst_5 : f32 to vector<128x128xf32>
    %9 = arith.maximumf %7, %8 : vector<128x128xf32>
    %10 = arith.truncf %9 : vector<128x128xf32> to vector<128x128xbf16>
    %c0_6 = arith.constant 0 : index
    %c0_7 = arith.constant 0 : index
    %11 = vector.load %arg3[%c0_6, %c0_7] : memref<128x128xbf16, #tpu.memory_space<vmem>>, vector<128x128xbf16>
    %cst_8 = arith.constant dense<0.000000e+00> : vector<128x128xf32>
    %12 = tpu.matmul %10, %11, %cst_8 {dimension_numbers = #tpu.dot_dimension_numbers<[1], [0], [0], [1], [0, 0, 1, 1], [], []>} : vector<128x128xbf16>, vector<128x128xbf16>, vector<128x128xf32> -> vector<128x128xf32>
    %13 = vector.extract_strided_slice %1 {offsets = [1, 0], sizes = [1, 128], strides = [1, 1]} : vector<2x128xf32> to vector<1x128xf32>
    %14 = vector.broadcast %13 : vector<1x128xf32> to vector<128x128xf32>
    %15 = arith.addf %12, %14 : vector<128x128xf32>
    %cst_9 = arith.constant 0.000000e+00 : f32
    %16 = vector.broadcast %cst_9 : f32 to vector<128x128xf32>
    %17 = arith.maximumf %15, %16 : vector<128x128xf32>
    %18 = arith.addf %0, %17 : vector<128x128xf32>
    %c0_10 = arith.constant 0 : index
    %c0_11 = arith.constant 0 : index
    %19 = vector.load %arg5[%c0_10, %c0_11] : memref<128x128xf32, #tpu.memory_space<vmem>>, vector<128x128xf32>
    tpu.vector_store %arg5[%c0_10, %c0_11], %18 {strides = array<i32>} : memref<128x128xf32, #tpu.memory_space<vmem>>, vector<128x128xf32>,
    return
  }
  func.func @transform_0(%arg0: i32) -> (i32, i32) {
    %c0_i32 = arith.constant 0 : i32
    %c0_i32_0 = arith.constant 0 : i32
    return %arg0, %c0_i32 : i32, i32
  }
  func.func @transform_1(%arg0: i32) -> (i32, i32) {
    %c0_i32 = arith.constant 0 : i32
    %c0_i32_0 = arith.constant 0 : i32
    %c0_i32_1 = arith.constant 0 : i32
    return %c0_i32, %c0_i32_0 : i32, i32
  }
  func.func @transform_2(%arg0: i32) -> (i32, i32) {
    %c0_i32 = arith.constant 0 : i32
    %c0_i32_0 = arith.constant 0 : i32
    %c0_i32_1 = arith.constant 0 : i32
    return %c0_i32, %c0_i32_0 : i32, i32
  }
  func.func @transform_3(%arg0: i32) -> (i32, i32) {
    %c0_i32 = arith.constant 0 : i32
    %c0_i32_0 = arith.constant 0 : i32
    %c0_i32_1 = arith.constant 0 : i32
    return %c0_i32, %c0_i32_0 : i32, i32
  }
  func.func @transform_4(%arg0: i32) -> (i32, i32) {
    %c0_i32 = arith.constant 0 : i32
    %c0_i32_0 = arith.constant 0 : i32
    return %arg0, %c0_i32 : i32, i32
  }
}

</mosaic_0001>

<llo_original>
// kernel: linear_block.1
$region0: #{linear_block.1}
  #allocation0 [shape = 'u32[]', space=smem, size = 0x4, offset = 0x4, fixed_abs, tag = 'smem constant byte address 0x4 - core index']
  #allocation1 [shape = 'u32[72,128]{1,0:T(1,128)}', space=vmem, size = 0x9000, scoped, tag = 'internal scratch']
  %s0 = inlined_call_operand.vmem [shape: f32[256,128], index: 0, kind: input, shape index: {}]
  %s1 = inlined_call_operand.vmem [shape: bf16[128,128], index: 1, kind: input, shape index: {}]
  %s2 = inlined_call_operand.vmem [shape: bf16[128,128], index: 2, kind: input, shape index: {}]
  %s3 = inlined_call_operand.vmem [shape: f32[2,128], index: 3, kind: input, shape index: {}]
  %s4 = inlined_call_operand.hbm [shape: f32[256,128], index: 4, kind: output, shape index: {}]
  %s5 = sld [smem:[#allocation0]]
  $region49: #{linear_block.1} parent=0
    _
  %s7 = ssub.s32 1, %s5
  %s8 = scalar_select 0, %s7, %s5
  $region1: #{linear_block.1} parent=0
    #allocation2 [shape = 'u8[131072]{0}', space=vmem, size = 0x20000, scoped, tag = 'output window, operand 0']
    #allocation3 [shape = 's32[2]{0}', space=sflag, size = 0x8, scoped, tag = 'scoped memory for linear_block.1']
    %9 = vsyncpa [#allocation3], 0
    %s10 = scalar_lea.sflag [#allocation3], 1
    %11 = vsyncpa %s10, 0
    loop: start=0, step=1, limit=4
    $region2: #{linear_block.1} parent=1 // loop_pre_header
      _
    $region3: #{linear_block.1} parent=1 // loop_header
      %s13 = sphi 0, %s17
      %p14 = scmp.ge.s32.totalorder %s13, 4
      %s23 = sphi 0, %s25
      %s26 = sphi 0, %s23
      %s27 = sphi 0, %s26
      %s43 = sphi 0, %s27
      %s47 = sphi 0, %s47
      %s49 = sphi 0, %s47
      %s50 = sphi 0, %s49
      %s64 = sphi 0, %s50
      %s68 = sphi 0, %s68
      %s70 = sphi 0, %s68
      %s71 = sphi 0, %s70
      %s85 = sphi 0, %s71
      %s89 = sphi 0, %s89
      %s91 = sphi 0, %s89
      %s92 = sphi 0, %s91
      %s106 = sphi 0, %s92
      %s112 = sphi 0, %s114
      %s115 = sphi 0, %s112
      %s116 = sphi 0, %s115
      %s132 = sphi 0, %s116
    $region4: #{linear_block.1} parent=1 // loop_header_branch
      %16 = sbr.rel (%p14) target = $region8
    $region5: #{linear_block.1} parent=1 // loop_body
      %s18 = ssub.s32 %s13, 1
      %s19 = ssub.s32 %s13, 2
      %s20 = sadd.s32 %s13, 1
      %s21 = ssub.s32 %s13, %s20
      %p22 = scmp.eq.s32.totalorder %s21, 0
      %s24 = sadd.s32 %s23, 1
      %s25 = scalar_select %p22, %s23, %s24
      %p28 = pneg %p22
      %p29 = scmp.eq.s32.totalorder %s13, 1
      %p30 = por %p28, %p29
      %p31 = scmp.ne.s32.totalorder %s23, %s26
      %p32 = scmp.eq.s32.totalorder %s13, 0
      %p33 = por %p31, %p32
      %p34 = scmp.ne.s32.totalorder %s23, %s26
      %p35 = scmp.eq.s32.totalorder %s18, 1
      %p36 = por %p34, %p35
      %p37 = scmp.ne.s32.totalorder %s26, %s27
      %p38 = scmp.eq.s32.totalorder %s18, 0
      %p39 = por %p37, %p38
      %p40 = scmp.ne.s32.totalorder %s26, %s27
      %p41 = scmp.eq.s32.totalorder %s19, 1
      %p42 = por %p40, %p41
      %p44 = scmp.ne.s32.totalorder %s27, %s43
      %p45 = scmp.eq.s32.totalorder %s19, 0
      %p46 = por %p44, %p45
      %s48 = sadd.s32 %s47, 1
      %p51 = scmp.eq.s32.totalorder %s13, 1
      %p52 = scmp.ne.s32.totalorder %s47, %s49
      %p53 = scmp.eq.s32.totalorder %s13, 0
      %p54 = por %p52, %p53
      %p55 = scmp.ne.s32.totalorder %s47, %s49
      %p56 = scmp.eq.s32.totalorder %s18, 1
      %p57 = por %p55, %p56
      %p58 = scmp.ne.s32.totalorder %s49, %s50
      %p59 = scmp.eq.s32.totalorder %s18, 0
      %p60 = por %p58, %p59
      %p61 = scmp.ne.s32.totalorder %s49, %s50
      %p62 = scmp.eq.s32.totalorder %s19, 1
      %p63 = por %p61, %p62
      %p65 = scmp.ne.s32.totalorder %s50, %s64
      %p66 = scmp.eq.s32.totalorder %s19, 0
      %p67 = por %p65, %p66
      %s69 = sadd.s32 %s68, 1
      %p72 = scmp.eq.s32.totalorder %s13, 1
      %p73 = scmp.ne.s32.totalorder %s68, %s70
      %p74 = scmp.eq.s32.totalorder %s13, 0
      %p75 = por %p73, %p74
      %p76 = scmp.ne.s32.totalorder %s68, %s70
      %p77 = scmp.eq.s32.totalorder %s18, 1
      %p78 = por %p76, %p77
      %p79 = scmp.ne.s32.totalorder %s70, %s71
      %p80 = scmp.eq.s32.totalorder %s18, 0
      %p81 = por %p79, %p80
      %p82 = scmp.ne.s32.totalorder %s70, %s71
      %p83 = scmp.eq.s32.totalorder %s19, 1
      %p84 = por %p82, %p83
      %p86 = scmp.ne.s32.totalorder %s71, %s85
      %p87 = scmp.eq.s32.totalorder %s19, 0
      %p88 = por %p86, %p87
      %s90 = sadd.s32 %s89, 1
      %p93 = scmp.eq.s32.totalorder %s13, 1
      %p94 = scmp.ne.s32.totalorder %s89, %s91
      %p95 = scmp.eq.s32.totalorder %s13, 0
      %p96 = por %p94, %p95
      %p97 = scmp.ne.s32.totalorder %s89, %s91
      %p98 = scmp.eq.s32.totalorder %s18, 1
      %p99 = por %p97, %p98
      %p100 = scmp.ne.s32.totalorder %s91, %s92
      %p101 = scmp.eq.s32.totalorder %s18, 0
      %p102 = por %p100, %p101
      %p103 = scmp.ne.s32.totalorder %s91, %s92
      %p104 = scmp.eq.s32.totalorder %s19, 1
      %p105 = por %p103, %p104
      %p107 = scmp.ne.s32.totalorder %s92, %s106
      %p108 = scmp.eq.s32.totalorder %s19, 0
      %p109 = por %p107, %p108
      %s110 = ssub.s32 %s13, %s20
      %p111 = scmp.eq.s32.totalorder %s110, 0
      %s113 = sadd.s32 %s112, 1
      %s114 = scalar_select %p111, %s112, %s113
      %p117 = pneg %p111
      %p118 = scmp.eq.s32.totalorder %s13, 1
      %p119 = por %p117, %p118
      %p120 = scmp.ne.s32.totalorder %s112, %s115
      %p121 = scmp.eq.s32.totalorder %s13, 0
      %p122 = por %p120, %p121
      %p123 = scmp.ne.s32.totalorder %s112, %s115
      %p124 = scmp.eq.s32.totalorder %s18, 1
      %p125 = por %p123, %p124
      %p126 = scmp.ne.s32.totalorder %s115, %s116
      %p127 = scmp.eq.s32.totalorder %s18, 0
      %p128 = por %p126, %p127
      %p129 = scmp.ne.s32.totalorder %s115, %s116
      %p130 = scmp.eq.s32.totalorder %s19, 1
      %p131 = por %p129, %p130
      %p133 = scmp.ne.s32.totalorder %s116, %s132
      %p134 = scmp.eq.s32.totalorder %s19, 0
      %p135 = por %p133, %p134
      %p136 = scmp.le.s32.totalorder 1, %s13
      %p137 = scmp.lt.s32.totalorder %s13, 3
      %p138 = pnand %p136, %p137
      %p139 = pneg %p138
      // Predicated region
      $region9: #{linear_block.1} parent=5 // pred_check
        _
      $region10: #{linear_block.1} parent=5 // pred_check_branch
        %141 = sbr.rel (%p138) target = $region12
      $region11: #{linear_block.1} parent=5 // pred_region
        %s142 = ssub.s32 %s13, 1
        // Predicated region
        $region13: #{linear_block.1} parent=11 // pred_check
          %p143 = pneg %p60
        $region14: #{linear_block.1} parent=11 // pred_check_branch
          %145 = sbr.rel (%p143) target = $region16
        $region15: #{linear_block.1} parent=11 // pred_region
          _
        $region16: #{linear_block.1} parent=11 // pred_fallthru
          _
        // Predicated region
        $region17: #{linear_block.1} parent=11 // pred_check
          %p146 = pneg %p81
        $region18: #{linear_block.1} parent=11 // pred_check_branch
          %148 = sbr.rel (%p146) target = $region20
        $region19: #{linear_block.1} parent=11 // pred_region
          _
        $region20: #{linear_block.1} parent=11 // pred_fallthru
          _
        // Predicated region
        $region21: #{linear_block.1} parent=11 // pred_check
          %p149 = pneg %p102
        $region22: #{linear_block.1} parent=11 // pred_check_branch
          %151 = sbr.rel (%p149) target = $region24
        $region23: #{linear_block.1} parent=11 // pred_region
          _
        $region24: #{linear_block.1} parent=11 // pred_fallthru
          _
      $region12: #{linear_block.1} parent=5 // pred_fallthru
        _
      %p152 = scmp.lt.s32.totalorder %s13, 2
      // Predicated region
      $region25: #{linear_block.1} parent=5 // pred_check
        %p153 = pneg %p152
      $region26: #{linear_block.1} parent=5 // pred_check_branch
        %155 = sbr.rel (%p153) target = $region28
      $region27: #{linear_block.1} parent=5 // pred_region
        // Predicated region
        $region29: #{linear_block.1} parent=27 // pred_check
          %p156 = pneg %p33
        $region30: #{linear_block.1} parent=27 // pred_check_branch
          %158 = sbr.rel (%p156) target = $region32
        $region31: #{linear_block.1} parent=27 // pred_region
          %s159 = smul.u32 16, %s13
          %p160 = scmp.lt.s32.totalorder %s159, 31
          %s161 = scalar_select %p160, %s159, 31
          %s162 = smul.addr %s161, 8
          %s163 = scalar_lea.vmem %s0, %s162
          %s164 = smul.u32 16, %s13
        $region32: #{linear_block.1} parent=27 // pred_fallthru
          _
      $region28: #{linear_block.1} parent=5 // pred_fallthru
        _
      %p165 = scmp.le.s32.totalorder 1, %s13
      %p166 = scmp.lt.s32.totalorder %s13, 3
      %p167 = pnand %p165, %p166
      %p168 = pneg %p167
      // Predicated region
      $region33: #{linear_block.1} parent=5 // pred_check
        _
      $region34: #{linear_block.1} parent=5 // pred_check_branch
        %170 = sbr.rel (%p167) target = $region36
      $region35: #{linear_block.1} parent=5 // pred_region
        %s171 = ssub.s32 %s13, 1
        %s172 = smul.u32 16, %s18
        %p173 = scmp.lt.s32.totalorder %s172, 31
        %s174 = scalar_select %p173, %s172, 31
        %s175 = smul.addr %s174, 8
        %s176 = scalar_lea.vmem %s0, %s175
        %p177 = pneg %p39
        %p178 = pneg %p36
        %p179 = pneg %p60
        %p180 = pneg %p57
        %p181 = pneg %p81
        %p182 = pneg %p78
        %p183 = pneg %p102
        %p184 = pneg %p99
        %p185 = pneg %p128
        %p186 = pneg %p125
        %s187 = sand.u32 %s115, 1
        %s188 = scalar_lea.sflag [#allocation3], %s187
        %s189 = sand.u32 %s115, 1
        %s190 = smul.addr %s189, 128
        %s191 = scalar_lea.vmem [#allocation2], %s190
        %s192 = smul.u32 16, %s18
        %p193 = scmp.lt.s32.totalorder %s192, 31
        %s194 = scalar_select %p193, %s192, 31
        %s195 = smul.addr %s194, 8
        %s196 = scalar_lea.vmem %s0, %s195
        %s197 = smul.u32 16, %s18
        %s198 = smul.u32 16, %s18
        %v199 = vld [vmem:[%s196] sm:$0xff]
        %v200 = vld [vmem:[%s196 + $0x8] sm:$0xff]
        %v201 = vld [vmem:[%s196 + $0x10] sm:$0xff]
        %v202 = vld [vmem:[%s196 + $0x18] sm:$0xff]
        %v203 = vld [vmem:[%s196 + $0x20] sm:$0xff]
        %v204 = vld [vmem:[%s196 + $0x28] sm:$0xff]
        %v205 = vld [vmem:[%s196 + $0x30] sm:$0xff]
        %v206 = vld [vmem:[%s196 + $0x38] sm:$0xff]
        %v207 = vld [vmem:[%s196 + $0x40] sm:$0xff]
        %v208 = vld [vmem:[%s196 + $0x48] sm:$0xff]
        %v209 = vld [vmem:[%s196 + $0x50] sm:$0xff]
        %v210 = vld [vmem:[%s196 + $0x58] sm:$0xff]
        %v211 = vld [vmem:[%s196 + $0x60] sm:$0xff]
        %v212 = vld [vmem:[%s196 + $0x68] sm:$0xff]
        %v213 = vld [vmem:[%s196 + $0x70] sm:$0xff]
        %v214 = vld [vmem:[%s196 + $0x78] sm:$0xff]
        %v215 = vld [vmem:[%s3] sm:$0x3]
        %v216 = vpack.c.bf16 %v200, %v199
        %v217 = vpack.c.bf16 %v202, %v201
        %v218 = vpack.c.bf16 %v204, %v203
        %v219 = vpack.c.bf16 %v206, %v205
        %v220 = vpack.c.bf16 %v208, %v207
        %v221 = vpack.c.bf16 %v210, %v209
        %v222 = vpack.c.bf16 %v212, %v211
        %v223 = vpack.c.bf16 %v214, %v213
        %v224 = vld [vmem:[%s1] sm:$0xf]
        %v225 = vld [vmem:[%s1 + $0x4] sm:$0xf]
        %v226 = vld [vmem:[%s1 + $0x8] sm:$0xf]
        %v227 = vld [vmem:[%s1 + $0xc] sm:$0xf]
        %v228 = vld [vmem:[%s1 + $0x10] sm:$0xf]
        %v229 = vld [vmem:[%s1 + $0x14] sm:$0xf]
        %v230 = vld [vmem:[%s1 + $0x18] sm:$0xf]
        %v231 = vld [vmem:[%s1 + $0x1c] sm:$0xf]
        %v232 = vld [vmem:[%s1 + $0x20] sm:$0xf]
        %v233 = vld [vmem:[%s1 + $0x24] sm:$0xf]
        %v234 = vld [vmem:[%s1 + $0x28] sm:$0xf]
        %v235 = vld [vmem:[%s1 + $0x2c] sm:$0xf]
        %v236 = vld [vmem:[%s1 + $0x30] sm:$0xf]
        %v237 = vld [vmem:[%s1 + $0x34] sm:$0xf]
        %v238 = vld [vmem:[%s1 + $0x38] sm:$0xf]
        %v239 = vld [vmem:[%s1 + $0x3c] sm:$0xf]
        %v240 = vperm.slane %v215, 0
        %v257 = vunpack.c.l.b16 %v224
        %v258 = vunpack.c.l.b16 %v225
        %v259 = vunpack.c.l.b16 %v226
        %v260 = vunpack.c.l.b16 %v227
        %v261 = vunpack.c.l.b16 %v228
        %v262 = vunpack.c.l.b16 %v229
        %v263 = vunpack.c.l.b16 %v230
        %v264 = vunpack.c.l.b16 %v231
        %v265 = vunpack.c.l.b16 %v232
        %v266 = vunpack.c.l.b16 %v233
        %v267 = vunpack.c.l.b16 %v234
        %v268 = vunpack.c.l.b16 %v235
        %v269 = vunpack.c.l.b16 %v236
        %v270 = vunpack.c.l.b16 %v237
        %v271 = vunpack.c.l.b16 %v238
        %v272 = vunpack.c.l.b16 %v239
        %v273 = vpack.c.b16 %v258, %v257
        %v274 = vpack.c.b16 %v260, %v259
        %v275 = vpack.c.b16 %v262, %v261
        %v276 = vpack.c.b16 %v264, %v263
        %v277 = vpack.c.b16 %v266, %v265
        %v278 = vpack.c.b16 %v268, %v267
        %v279 = vpack.c.b16 %v270, %v269
        %v280 = vpack.c.b16 %v272, %v271
        %289 = vmatpush.bf16.msra.mxu0 %v280
        %290 = vmatpush.bf16.msra.mxu0 %v279
        %291 = vmatpush.bf16.msra.mxu0 %v278
        %292 = vmatpush.bf16.msra.mxu0 %v277
        %293 = vmatpush.bf16.msra.mxu0 %v276
        %294 = vmatpush.bf16.msra.mxu0 %v275
        %295 = vmatpush.bf16.msra.mxu0 %v274
        %296 = vmatpush.bf16.msra.mxu0 %v273
        %297 = vmatmul.bf16.gmra.mxu0 %v216
        %v298 = vpop.f32.mrf.mxu0
        %v299 = vadd.f32 %v240, %v298
        %v300 = vpop.f32.mrf.mxu0
        %v301 = vadd.f32 %v240, %v300
        %302 = vmatmul.bf16.gmra.mxu0 %v217
        %v303 = vpop.f32.mrf.mxu0
        %v304 = vadd.f32 %v240, %v303
        %v305 = vpop.f32.mrf.mxu0
        %v306 = vadd.f32 %v240, %v305
        %307 = vmatmul.bf16.gmra.mxu0 %v218
        %v308 = vpop.f32.mrf.mxu0
        %v309 = vadd.f32 %v240, %v308
        %v310 = vpop.f32.mrf.mxu0
        %v311 = vadd.f32 %v240, %v310
        %312 = vmatmul.bf16.gmra.mxu0 %v219
        %v313 = vpop.f32.mrf.mxu0
        %v314 = vadd.f32 %v240, %v313
        %v315 = vpop.f32.mrf.mxu0
        %v316 = vadd.f32 %v240, %v315
        %317 = vmatmul.bf16.gmra.mxu0 %v220
        %v318 = vpop.f32.mrf.mxu0
        %v319 = vadd.f32 %v240, %v318
        %v320 = vpop.f32.mrf.mxu0
        %v321 = vadd.f32 %v240, %v320
        %322 = vmatmul.bf16.gmra.mxu0 %v221
        %v323 = vpop.f32.mrf.mxu0
        %v324 = vadd.f32 %v240, %v323
        %v325 = vpop.f32.mrf.mxu0
        %v326 = vadd.f32 %v240, %v325
        %327 = vmatmul.bf16.gmra.mxu0 %v222
        %v328 = vpop.f32.mrf.mxu0
        %v329 = vadd.f32 %v240, %v328
        %v330 = vpop.f32.mrf.mxu0
        %v331 = vadd.f32 %v240, %v330
        %332 = vmatmul.bf16.gmra.mxu0 %v223
        %v333 = vpop.f32.mrf.mxu0
        %v334 = vadd.f32 %v240, %v333
        %v335 = vpop.f32.mrf.mxu0
        %v336 = vadd.f32 %v240, %v335
        %337 = vdwg.mxu0
        %v338 = vmax.f32 %v299, 0.0
        %v339 = vmax.f32 %v301, 0.0
        %v340 = vmax.f32 %v304, 0.0
        %v341 = vmax.f32 %v306, 0.0
        %v342 = vmax.f32 %v309, 0.0
        %v343 = vmax.f32 %v311, 0.0
        %v344 = vmax.f32 %v314, 0.0
        %v345 = vmax.f32 %v316, 0.0
        %v346 = vmax.f32 %v319, 0.0
        %v347 = vmax.f32 %v321, 0.0
        %v348 = vmax.f32 %v324, 0.0
        %v349 = vmax.f32 %v326, 0.0
        %v350 = vmax.f32 %v329, 0.0
        %v351 = vmax.f32 %v331, 0.0
        %v352 = vmax.f32 %v334, 0.0
        %v353 = vmax.f32 %v336, 0.0
        %v354 = vpack.c.bf16 %v339, %v338
        %v355 = vpack.c.bf16 %v341, %v340
        %v356 = vpack.c.bf16 %v343, %v342
        %v357 = vpack.c.bf16 %v345, %v344
        %v358 = vpack.c.bf16 %v347, %v346
        %v359 = vpack.c.bf16 %v349, %v348
        %v360 = vpack.c.bf16 %v351, %v350
        %v361 = vpack.c.bf16 %v353, %v352
        %v362 = vld [vmem:[%s2] sm:$0xf]
        %v363 = vld [vmem:[%s2 + $0x4] sm:$0xf]
        %v364 = vld [vmem:[%s2 + $0x8] sm:$0xf]
        %v365 = vld [vmem:[%s2 + $0xc] sm:$0xf]
        %v366 = vld [vmem:[%s2 + $0x10] sm:$0xf]
        %v367 = vld [vmem:[%s2 + $0x14] sm:$0xf]
        %v368 = vld [vmem:[%s2 + $0x18] sm:$0xf]
        %v369 = vld [vmem:[%s2 + $0x1c] sm:$0xf]
        %v370 = vld [vmem:[%s2 + $0x20] sm:$0xf]
        %v371 = vld [vmem:[%s2 + $0x24] sm:$0xf]
        %v372 = vld [vmem:[%s2 + $0x28] sm:$0xf]
        %v373 = vld [vmem:[%s2 + $0x2c] sm:$0xf]
        %v374 = vld [vmem:[%s2 + $0x30] sm:$0xf]
        %v375 = vld [vmem:[%s2 + $0x34] sm:$0xf]
        %v376 = vld [vmem:[%s2 + $0x38] sm:$0xf]
        %v377 = vld [vmem:[%s2 + $0x3c] sm:$0xf]
        %v378 = vperm.slane %v215, 1
        %v395 = vunpack.c.l.b16 %v362
        %v396 = vunpack.c.l.b16 %v363
        %v397 = vunpack.c.l.b16 %v364
        %v398 = vunpack.c.l.b16 %v365
        %v399 = vunpack.c.l.b16 %v366
        %v400 = vunpack.c.l.b16 %v367
        %v401 = vunpack.c.l.b16 %v368
        %v402 = vunpack.c.l.b16 %v369
        %v403 = vunpack.c.l.b16 %v370
        %v404 = vunpack.c.l.b16 %v371
        %v405 = vunpack.c.l.b16 %v372
        %v406 = vunpack.c.l.b16 %v373
        %v407 = vunpack.c.l.b16 %v374
        %v408 = vunpack.c.l.b16 %v375
        %v409 = vunpack.c.l.b16 %v376
        %v410 = vunpack.c.l.b16 %v377
        %v411 = vpack.c.b16 %v396, %v395
        %v412 = vpack.c.b16 %v398, %v397
        %v413 = vpack.c.b16 %v400, %v399
        %v414 = vpack.c.b16 %v402, %v401
        %v415 = vpack.c.b16 %v404, %v403
        %v416 = vpack.c.b16 %v406, %v405
        %v417 = vpack.c.b16 %v408, %v407
        %v418 = vpack.c.b16 %v410, %v409
        %427 = vmatpush.bf16.msra.mxu0 %v418
        %428 = vmatpush.bf16.msra.mxu0 %v417
        %429 = vmatpush.bf16.msra.mxu0 %v416
        %430 = vmatpush.bf16.msra.mxu0 %v415
        %431 = vmatpush.bf16.msra.mxu0 %v414
        %432 = vmatpush.bf16.msra.mxu0 %v413
        %433 = vmatpush.bf16.msra.mxu0 %v412
        %434 = vmatpush.bf16.msra.mxu0 %v411
        %435 = vmatmul.bf16.gmra.mxu0 %v354
        %v436 = vpop.f32.mrf.mxu0
        %v437 = vadd.f32 %v378, %v436
        %v438 = vpop.f32.mrf.mxu0
        %v439 = vadd.f32 %v378, %v438
        %440 = vmatmul.bf16.gmra.mxu0 %v355
        %v441 = vpop.f32.mrf.mxu0
        %v442 = vadd.f32 %v378, %v441
        %v443 = vpop.f32.mrf.mxu0
        %v444 = vadd.f32 %v378, %v443
        %445 = vmatmul.bf16.gmra.mxu0 %v356
        %v446 = vpop.f32.mrf.mxu0
        %v447 = vadd.f32 %v378, %v446
        %v448 = vpop.f32.mrf.mxu0
        %v449 = vadd.f32 %v378, %v448
        %450 = vmatmul.bf16.gmra.mxu0 %v357
        %v451 = vpop.f32.mrf.mxu0
        %v452 = vadd.f32 %v378, %v451
        %v453 = vpop.f32.mrf.mxu0
        %v454 = vadd.f32 %v378, %v453
        %455 = vmatmul.bf16.gmra.mxu0 %v358
        %v456 = vpop.f32.mrf.mxu0
        %v457 = vadd.f32 %v378, %v456
        %v458 = vpop.f32.mrf.mxu0
        %v459 = vadd.f32 %v378, %v458
        %460 = vmatmul.bf16.gmra.mxu0 %v359
        %v461 = vpop.f32.mrf.mxu0
        %v462 = vadd.f32 %v378, %v461
        %v463 = vpop.f32.mrf.mxu0
        %v464 = vadd.f32 %v378, %v463
        %465 = vmatmul.bf16.gmra.mxu0 %v360
        %v466 = vpop.f32.mrf.mxu0
        %v467 = vadd.f32 %v378, %v466
        %v468 = vpop.f32.mrf.mxu0
        %v469 = vadd.f32 %v378, %v468
        %470 = vmatmul.bf16.gmra.mxu0 %v361
        %v471 = vpop.f32.mrf.mxu0
        %v472 = vadd.f32 %v378, %v471
        %v473 = vpop.f32.mrf.mxu0
        %v474 = vadd.f32 %v378, %v473
        %475 = vdwg.mxu0
        %v476 = vmax.f32 %v437, 0.0
        %v477 = vmax.f32 %v439, 0.0
        %v478 = vmax.f32 %v442, 0.0
        %v479 = vmax.f32 %v444, 0.0
        %v480 = vmax.f32 %v447, 0.0
        %v481 = vmax.f32 %v449, 0.0
        %v482 = vmax.f32 %v452, 0.0
        %v483 = vmax.f32 %v454, 0.0
        %v484 = vmax.f32 %v457, 0.0
        %v485 = vmax.f32 %v459, 0.0
        %v486 = vmax.f32 %v462, 0.0
        %v487 = vmax.f32 %v464, 0.0
        %v488 = vmax.f32 %v467, 0.0
        %v489 = vmax.f32 %v469, 0.0
        %v490 = vmax.f32 %v472, 0.0
        %v491 = vmax.f32 %v474, 0.0
        %v492 = vadd.f32 %v199, %v476
        %v493 = vadd.f32 %v200, %v477
        %v494 = vadd.f32 %v201, %v478
        %v495 = vadd.f32 %v202, %v479
        %v496 = vadd.f32 %v203, %v480
        %v497 = vadd.f32 %v204, %v481
        %v498 = vadd.f32 %v205, %v482
        %v499 = vadd.f32 %v206, %v483
        %v500 = vadd.f32 %v207, %v484
        %v501 = vadd.f32 %v208, %v485
        %v502 = vadd.f32 %v209, %v486
        %v503 = vadd.f32 %v210, %v487
        %v504 = vadd.f32 %v211, %v488
        %v505 = vadd.f32 %v212, %v489
        %v506 = vadd.f32 %v213, %v490
        %v507 = vadd.f32 %v214, %v491
        %508 = vst [vmem:[%s191] sm:$0xff] %v492
        %509 = vst [vmem:[%s191 + $0x8] sm:$0xff] %v493
        %510 = vst [vmem:[%s191 + $0x10] sm:$0xff] %v494
        %511 = vst [vmem:[%s191 + $0x18] sm:$0xff] %v495
        %512 = vst [vmem:[%s191 + $0x20] sm:$0xff] %v496
        %513 = vst [vmem:[%s191 + $0x28] sm:$0xff] %v497
        %514 = vst [vmem:[%s191 + $0x30] sm:$0xff] %v498
        %515 = vst [vmem:[%s191 + $0x38] sm:$0xff] %v499
        %516 = vst [vmem:[%s191 + $0x40] sm:$0xff] %v500
        %517 = vst [vmem:[%s191 + $0x48] sm:$0xff] %v501
        %518 = vst [vmem:[%s191 + $0x50] sm:$0xff] %v502
        %519 = vst [vmem:[%s191 + $0x58] sm:$0xff] %v503
        %520 = vst [vmem:[%s191 + $0x60] sm:$0xff] %v504
        %521 = vst [vmem:[%s191 + $0x68] sm:$0xff] %v505
        %522 = vst [vmem:[%s191 + $0x70] sm:$0xff] %v506
        %523 = vst [vmem:[%s191 + $0x78] sm:$0xff] %v507
        %s524 = sand.u32 %s115, 1
        %s525 = scalar_lea.sflag [#allocation3], %s524
        %s526 = sand.u32 %s115, 1
        %s527 = smul.addr %s526, 128
        %s528 = scalar_lea.vmem [#allocation2], %s527
        // Predicated region
        $region37: #{linear_block.1} parent=35 // pred_check
          %p529 = pneg %p125
        $region38: #{linear_block.1} parent=35 // pred_check_branch
          %531 = sbr.rel (%p529) target = $region40
        $region39: #{linear_block.1} parent=35 // pred_region
          %s532 = smul.u32 16, %s18
          %534 = vsyncadd %s525, 0
          %s535 = smul.addr %s532, 8
          %s536 = scalar_lea.hbm %s4, %s535
          %s537 = sshll.u32 %s528, 4
          %s538 = int_to_ptr.vmem [resolvable:$true] %s537
          %s539 = sshll.u32 %s536, 4
          %s540 = int_to_ptr.hbm [resolvable:$true] %s539
          %545 = dma.vmem_to_hbm [thread:$0]  %s538, 2048, %s540, %s525, 128, 128, 8
        $region40: #{linear_block.1} parent=35 // pred_fallthru
          _
      $region36: #{linear_block.1} parent=5 // pred_fallthru
        _
      %p546 = scmp.le.s32.totalorder 2, %s13
      // Predicated region
      $region41: #{linear_block.1} parent=5 // pred_check
        %p547 = pneg %p546
      $region42: #{linear_block.1} parent=5 // pred_check_branch
        %549 = sbr.rel (%p547) target = $region44
      $region43: #{linear_block.1} parent=5 // pred_region
        %s550 = ssub.s32 %s13, 2
        // Predicated region
        $region45: #{linear_block.1} parent=43 // pred_check
          %p551 = pneg %p131
        $region46: #{linear_block.1} parent=43 // pred_check_branch
          %553 = sbr.rel (%p551) target = $region48
        $region47: #{linear_block.1} parent=43 // pred_region
          %s554 = sand.u32 %s116, 1
          %s555 = scalar_lea.sflag [#allocation3], %s554
          %s556 = sand.u32 %s116, 1
          %s557 = smul.addr %s556, 128
          %s558 = scalar_lea.vmem [#allocation2], %s557
          %560 = dma.done %s555, 2048
        $region48: #{linear_block.1} parent=43 // pred_fallthru
          _
      $region44: #{linear_block.1} parent=5 // pred_fallthru
        _
    $region6: #{linear_block.1} parent=1 // loop_footer
      %s17 = sadd.s32 1, %s13
    $region7: #{linear_block.1} parent=1 // loop_footer_branch
      %12 = sbr.rel target = $region3
    $region8: #{linear_block.1} parent=1 // loop_exit
      _
    %561 = vsyncpa [#allocation3], 1
    %s562 = scalar_lea.sflag [#allocation3], 1
    %563 = vsyncpa %s562, 1

</llo_original>
